<compile_context>
chip_gen: v6e
topology: v6e:2x2x1
jax: 0.10.0
libtpu: 0.0.40
codegen_flags: <defaults>
</compile_context>

<pallas_src>
import jax
import jax.numpy as jnp
from jax.experimental import pallas as pl
from jax.experimental.pallas import tpu as pltpu


def _round_up(n, m):
    return ((n + m - 1) // m) * m


def _cdiv(a, b):
    return -(-a // b)


def critic_kernel(xa_ref, w_in_ref, b1_ref, w2h_ref, b2_ref, w3_ref, b3_ref, out_ref):
    h1p = b1_ref.shape[1]
    out_dim = out_ref.shape[1]

    # Combined small-K input matmul on the MXU (f32, K = padded state+action = 8):
    # columns [0:h1p)  = x @ W1        (layer-1 pre-activation)
    # columns [h1p: )  = action @ W2_a (action contribution to layer 2)
    zin = jnp.dot(xa_ref[...], w_in_ref[...],
                  preferred_element_type=jnp.float32)          # (TB, h1p+h2p) f32

    # Layer 1: bias + ReLU.
    h = jnp.maximum(zin[:, :h1p] + b1_ref[...], 0.0)           # (TB, h1p) f32

    # Layer 2: big matmul on the MXU (bf16 operands, f32 accumulate), then add
    # the precomputed action contribution + bias, ReLU.
    z = jnp.dot(h.astype(jnp.bfloat16), w2h_ref[...],
                preferred_element_type=jnp.float32)            # (TB, h2p) f32
    z = jnp.maximum(z + zin[:, h1p:] + b2_ref[...], 0.0)       # (TB, h2p) f32

    # Layer 3: one useful output column per action dim -> VPU multiply +
    # XLU lane reduce.  No padded MXU pass, no 128-wide padded output store.
    w3 = w3_ref[...]                                           # (out_dim, h2p) f32
    b3 = b3_ref[...]                                           # (1, out_dim)  f32
    for k in range(out_dim):                                   # out_dim is tiny (1)
        out_ref[:, k:k + 1] = (
            jnp.sum(z * w3[k:k + 1, :], axis=-1, keepdims=True) + b3[:, k:k + 1])


def _pick_batch_tile(B):
    """Batch-tile selection per the perf review.

    - tiny B:   one tile, rounded to 8 (kernel is launch/weight-DMA bound anyway)
    - mid B:    exactly 2 parallel steps so a v7x chip can use both TensorCores
    - large B:  512-row tiles to amortize the ~0.35us per-grid-step overhead
    """
    if B <= 256:
        return _round_up(max(B, 8), 8)
    if B < 1024:
        return _round_up(_cdiv(B, 2), 8)
    return 512


def critic_net_forward(x, action, packed):
    """x: (B, state_dim) f32, action: (B, action_dim) f32 -> (B, action_dim) f32."""
    (w_in, b1, w2h, b2, w3, b3) = packed
    B, state_dim = x.shape
    action_dim = action.shape[1]
    in_p = w_in.shape[0]
    h1p = b1.shape[1]
    h2p = b2.shape[1]
    out_dim = w3.shape[0]

    tb = _pick_batch_tile(B)
    b_pad = _round_up(B, tb)

    # Pack x and action into one zero-padded operand for the combined input
    # matmul (pads are exact: zero rows/cols contribute zero).
    xa = jnp.zeros((b_pad, in_p), jnp.float32)
    xa = xa.at[:B, :state_dim].set(x)
    xa = xa.at[:B, state_dim:state_dim + action_dim].set(action)

    grid = (b_pad // tb,)

    flops = 2 * b_pad * (in_p * (h1p + h2p) + h1p * h2p + h2p * out_dim)
    bytes_accessed = int(
        xa.size * 4 + b_pad * out_dim * 4
        + sum(int(p.size) * p.dtype.itemsize for p in packed))

    out = pl.pallas_call(
        critic_kernel,
        out_shape=jax.ShapeDtypeStruct((b_pad, out_dim), jnp.float32),
        grid_spec=pltpu.PrefetchScalarGridSpec(
            num_scalar_prefetch=0,
            grid=grid,
            in_specs=[
                # batch-tiled packed [x | action] activations
                pl.BlockSpec((tb, in_p), lambda i: (i, 0)),
                # weights: constant index_map -> fetched once, VMEM-resident
                pl.BlockSpec(w_in.shape, lambda i: (0, 0)),
                pl.BlockSpec(b1.shape, lambda i: (0, 0)),
                pl.BlockSpec(w2h.shape, lambda i: (0, 0)),
                pl.BlockSpec(b2.shape, lambda i: (0, 0)),
                pl.BlockSpec(w3.shape, lambda i: (0, 0)),
                pl.BlockSpec(b3.shape, lambda i: (0, 0)),
            ],
            out_specs=pl.BlockSpec((tb, out_dim), lambda i: (i, 0)),
        ),
        compiler_params=pltpu.CompilerParams(
            dimension_semantics=("parallel",)),
        cost_estimate=pl.CostEstimate(
            flops=flops, transcendentals=0, bytes_accessed=bytes_accessed),
    )(xa, w_in, b1, w2h, b2, w3, b3)

    return out[:B, :]


def init_critic_params(key, state_dim=3, action_dim=1, hidden_dim=(400, 300)):
    """PyTorch-default-style init (U[-1/sqrt(fan_in), +]); natural (unpadded) shapes."""
    h1, h2 = hidden_dim
    ks = jax.random.split(key, 6)

    def uni(k, shape, fan_in):
        bound = 1.0 / jnp.sqrt(jnp.float32(fan_in))
        return jax.random.uniform(k, shape, jnp.float32, -bound, bound)

    w1 = uni(ks[0], (state_dim, h1), state_dim)
    b1 = uni(ks[1], (h1,), state_dim)
    w2 = uni(ks[2], (h1 + action_dim, h2), h1 + action_dim)
    b2 = uni(ks[3], (h2,), h1 + action_dim)
    w3 = uni(ks[4], (h2, action_dim), h2)
    b3 = uni(ks[5], (action_dim,), h2)
    return (w1, b1, w2, b2, w3, b3)


def pack_params(params):
    """Pad to lane/MXU-friendly sizes (exact: pads are zero).

    Only the big layer-2 weight is bf16; layer-3 weight is a plain f32 row
    (no 128-wide zero pad) and the tiny combined input weight stays f32.
    """
    w1, b1, w2, b2, w3, b3 = params
    state_dim, h1 = w1.shape
    action_dim = w2.shape[0] - h1
    h2, out_dim = w3.shape

    h1p = _round_up(h1, 256)                              # 400 -> 512
    h2p = _round_up(h2, 128)                              # 300 -> 384
    in_p = max(8, _round_up(state_dim + action_dim, 8))   # 3+1 -> 8

    # Combined input weight: [x | action | pad] @ w_in gives layer-1
    # pre-activations (cols :h1p) and the action part of layer 2 (cols h1p:).
    w_in = jnp.zeros((in_p, h1p + h2p), jnp.float32)
    w_in = w_in.at[:state_dim, :h1].set(w1)
    w_in = w_in.at[state_dim:state_dim + action_dim, h1p:h1p + h2].set(w2[h1:])

    b1p = jnp.zeros((1, h1p), jnp.float32).at[0, :h1].set(b1)
    w2h = jnp.zeros((h1p, h2p), jnp.float32).at[:h1, :h2].set(w2[:h1]).astype(jnp.bfloat16)
    b2p = jnp.zeros((1, h2p), jnp.float32).at[0, :h2].set(b2)
    w3r = jnp.zeros((out_dim, h2p), jnp.float32).at[:, :h2].set(w3.T)   # rows
    b3p = b3.reshape(1, out_dim).astype(jnp.float32)
    return (w_in, b1p, w2h, b2p, w3r, b3p)


def critic_net_reference_f32(x, action, params):
    """Exact f32 reference matching the PyTorch forward (with concat)."""
    w1, b1, w2, b2, w3, b3 = params
    hp = jax.lax.Precision.HIGHEST
    h = jnp.maximum(jnp.dot(x, w1, precision=hp) + b1, 0.0)
    z = jnp.concatenate([h, action], axis=1)
    z = jnp.maximum(jnp.dot(z, w2, precision=hp) + b2, 0.0)
    return jnp.dot(z, w3, precision=hp) + b3


def critic_net_reference_mirrored(x, action, packed):
    """Plain-JAX reference mirroring the kernel's exact (padded, bf16-dot) arithmetic."""
    w_in, b1, w2h, b2, w3, b3 = packed
    B, state_dim = x.shape
    action_dim = action.shape[1]
    in_p = w_in.shape[0]
    h1p = b1.shape[1]
    hp = jax.lax.Precision.HIGHEST

    xa = jnp.zeros((B, in_p), jnp.float32)
    xa = xa.at[:, :state_dim].set(x)
    xa = xa.at[:, state_dim:state_dim + action_dim].set(action)

    zin = jnp.dot(xa, w_in, precision=hp)
    h = jnp.maximum(zin[:, :h1p] + b1, 0.0)
    z = jnp.dot(h.astype(jnp.bfloat16), w2h, preferred_element_type=jnp.float32)
    z = jnp.maximum(z + zin[:, h1p:] + b2, 0.0)
    return jnp.dot(z, w3.T, precision=hp) + b3


if __name__ == "__main__":
    state_dim, action_dim, hidden_dim = 3, 1, (400, 300)

    key = jax.random.PRNGKey(0)
    kx, ka, kp = jax.random.split(key, 3)

    params = init_critic_params(kp, state_dim, action_dim, hidden_dim)
    packed = pack_params(params)

    # Exercise both the tiny single-tile path (B=8) and the 2-step
    # (megacore-friendly) grid path (B=300 -> two 152-row tiles).
    for B in (8, 300):
        kxb, kab = jax.random.split(jax.random.fold_in(kx, B))
        x = jax.random.normal(kxb, (B, state_dim), jnp.float32)
        action = jax.random.normal(kab, (B, action_dim), jnp.float32)

        q = jax.block_until_ready(critic_net_forward(x, action, packed))
        assert q.shape == (B, action_dim)

        # Tight check vs a reference mirroring the kernel's bf16-dot arithmetic.
        q_mirror = critic_net_reference_mirrored(x, action, packed)
        assert jnp.allclose(q, q_mirror, atol=1e-2, rtol=1e-2), "mismatch vs mirrored reference"

        # Semantic check vs the exact f32 PyTorch-style forward (bf16 w2 -> looser tol).
        q_exact = critic_net_reference_f32(x, action, params)
        assert jnp.allclose(q, q_exact, atol=5e-2, rtol=5e-2), "mismatch vs exact f32 reference"

    print("KERNEL_OK")
</pallas_src>

<mosaic_0001>
module attributes {stable_mosaic.version = 11 : i64} {
  func.func @critic_kernel(%arg0: i32, %arg1: memref<8x8xf32, #tpu.memory_space<vmem>>, %arg2: memref<8x896xf32, #tpu.memory_space<vmem>>, %arg3: memref<1x512xf32, #tpu.memory_space<vmem>>, %arg4: memref<512x384xbf16, #tpu.memory_space<vmem>>, %arg5: memref<1x384xf32, #tpu.memory_space<vmem>>, %arg6: memref<1x384xf32, #tpu.memory_space<vmem>>, %arg7: memref<1x1xf32, #tpu.memory_space<vmem>>, %arg8: memref<8x1xf32, #tpu.memory_space<vmem>>) attributes {dimension_semantics = [#tpu.dimension_semantics<parallel>], iteration_bounds = array<i64: 1>, scalar_prefetch = 0 : i64, scratch_operands = 0 : i64, tpu.core_type = #tpu.core_type<tc>, window_params = [{transform_indices = @transform_0, window_bounds = array<i64: 8, 8>}, {pipeline_mode = #tpu.pipeline_mode<synchronous>, transform_indices = @transform_1, window_bounds = array<i64: 8, 896>}, {pipeline_mode = #tpu.pipeline_mode<synchronous>, transform_indices = @transform_2, window_bounds = array<i64: 1, 512>}, {pipeline_mode = #tpu.pipeline_mode<synchronous>, transform_indices = @transform_3, window_bounds = array<i64: 512, 384>}, {pipeline_mode = #tpu.pipeline_mode<synchronous>, transform_indices = @transform_4, window_bounds = array<i64: 1, 384>}, {pipeline_mode = #tpu.pipeline_mode<synchronous>, transform_indices = @transform_5, window_bounds = array<i64: 1, 384>}, {pipeline_mode = #tpu.pipeline_mode<synchronous>, transform_indices = @transform_6, window_bounds = array<i64: 1, 1>}, {transform_indices = @transform_7, window_bounds = array<i64: 8, 1>}]} {
    %c0 = arith.constant 0 : index
    %c0_0 = arith.constant 0 : index
    %0 = vector.load %arg1[%c0, %c0_0] : memref<8x8xf32, #tpu.memory_space<vmem>>, vector<8x8xf32>
    %c0_1 = arith.constant 0 : index
    %c0_2 = arith.constant 0 : index
    %1 = vector.load %arg2[%c0_1, %c0_2] : memref<8x896xf32, #tpu.memory_space<vmem>>, vector<8x896xf32>
    %cst = arith.constant dense<0.000000e+00> : vector<8x896xf32>
    %2 = tpu.matmul %0, %1, %cst {dimension_numbers = #tpu.dot_dimension_numbers<[1], [0], [0], [1], [0, 0, 1, 1], [], []>} : vector<8x8xf32>, vector<8x896xf32>, vector<8x896xf32> -> vector<8x896xf32>
    %3 = vector.extract_strided_slice %2 {offsets = [0, 0], sizes = [8, 512], strides = [1, 1]} : vector<8x896xf32> to vector<8x512xf32>
    %c0_3 = arith.constant 0 : index
    %c0_4 = arith.constant 0 : index
    %4 = vector.load %arg3[%c0_3, %c0_4] : memref<1x512xf32, #tpu.memory_space<vmem>>, vector<1x512xf32>
    %5 = vector.broadcast %4 : vector<1x512xf32> to vector<8x512xf32>
    %6 = arith.addf %3, %5 : vector<8x512xf32>
    %cst_5 = arith.constant 0.000000e+00 : f32
    %7 = vector.broadcast %cst_5 : f32 to vector<8x512xf32>
    %8 = arith.maximumf %6, %7 : vector<8x512xf32>
    %9 = arith.truncf %8 : vector<8x512xf32> to vector<8x512xbf16>
    %c0_6 = arith.constant 0 : index
    %c0_7 = arith.constant 0 : index
    %10 = vector.load %arg4[%c0_6, %c0_7] : memref<512x384xbf16, #tpu.memory_space<vmem>>, vector<512x384xbf16>
    %cst_8 = arith.constant dense<0.000000e+00> : vector<8x384xf32>
    %11 = tpu.matmul %9, %10, %cst_8 {dimension_numbers = #tpu.dot_dimension_numbers<[1], [0], [0], [1], [0, 0, 1, 1], [], []>} : vector<8x512xbf16>, vector<512x384xbf16>, vector<8x384xf32> -> vector<8x384xf32>
    %12 = vector.extract_strided_slice %2 {offsets = [0, 512], sizes = [8, 384], strides = [1, 1]} : vector<8x896xf32> to vector<8x384xf32>
    %13 = arith.addf %11, %12 : vector<8x384xf32>
    %c0_9 = arith.constant 0 : index
    %c0_10 = arith.constant 0 : index
    %14 = vector.load %arg5[%c0_9, %c0_10] : memref<1x384xf32, #tpu.memory_space<vmem>>, vector<1x384xf32>
    %15 = vector.broadcast %14 : vector<1x384xf32> to vector<8x384xf32>
    %16 = arith.addf %13, %15 : vector<8x384xf32>
    %cst_11 = arith.constant 0.000000e+00 : f32
    %17 = vector.broadcast %cst_11 : f32 to vector<8x384xf32>
    %18 = arith.maximumf %16, %17 : vector<8x384xf32>
    %c0_12 = arith.constant 0 : index
    %c0_13 = arith.constant 0 : index
    %19 = vector.load %arg6[%c0_12, %c0_13] : memref<1x384xf32, #tpu.memory_space<vmem>>, vector<1x384xf32>
    %c0_14 = arith.constant 0 : index
    %c0_15 = arith.constant 0 : index
    %20 = vector.load %arg7[%c0_14, %c0_15] : memref<1x1xf32, #tpu.memory_space<vmem>>, vector<1x1xf32>
    %21 = vector.broadcast %19 : vector<1x384xf32> to vector<8x384xf32>
    %22 = arith.mulf %18, %21 : vector<8x384xf32>
    %cst_16 = arith.constant dense<0.000000e+00> : vector<8xf32>
    %23 = vector.multi_reduction <add>, %22, %cst_16 [1] : vector<8x384xf32> to vector<8xf32>
    %24 = vector.shape_cast %23 : vector<8xf32> to vector<8x1xf32>
    %25 = vector.broadcast %20 : vector<1x1xf32> to vector<8x1xf32>
    %26 = arith.addf %24, %25 : vector<8x1xf32>
    %c0_17 = arith.constant 0 : index
    %c0_18 = arith.constant 0 : index
    %27 = vector.load %arg8[%c0_17, %c0_18] : memref<8x1xf32, #tpu.memory_space<vmem>>, vector<8x1xf32>
    tpu.vector_store %arg8[%c0_17, %c0_18], %26 {strides = array<i32>} : memref<8x1xf32, #tpu.memory_space<vmem>>, vector<8x1xf32>,
    return
  }
  func.func @transform_0(%arg0: i32) -> (i32, i32) {
    %c0_i32 = arith.constant 0 : i32
    %c0_i32_0 = arith.constant 0 : i32
    return %arg0, %c0_i32 : i32, i32
  }
  func.func @transform_1(%arg0: i32) -> (i32, i32) {
    %c0_i32 = arith.constant 0 : i32
    %c0_i32_0 = arith.constant 0 : i32
    %c0_i32_1 = arith.constant 0 : i32
    return %c0_i32, %c0_i32_0 : i32, i32
  }
  func.func @transform_2(%arg0: i32) -> (i32, i32) {
    %c0_i32 = arith.constant 0 : i32
    %c0_i32_0 = arith.constant 0 : i32
    %c0_i32_1 = arith.constant 0 : i32
    return %c0_i32, %c0_i32_0 : i32, i32
  }
  func.func @transform_3(%arg0: i32) -> (i32, i32) {
    %c0_i32 = arith.constant 0 : i32
    %c0_i32_0 = arith.constant 0 : i32
    %c0_i32_1 = arith.constant 0 : i32
    return %c0_i32, %c0_i32_0 : i32, i32
  }
  func.func @transform_4(%arg0: i32) -> (i32, i32) {
    %c0_i32 = arith.constant 0 : i32
    %c0_i32_0 = arith.constant 0 : i32
    %c0_i32_1 = arith.constant 0 : i32
    return %c0_i32, %c0_i32_0 : i32, i32
  }
  func.func @transform_5(%arg0: i32) -> (i32, i32) {
    %c0_i32 = arith.constant 0 : i32
    %c0_i32_0 = arith.constant 0 : i32
    %c0_i32_1 = arith.constant 0 : i32
    return %c0_i32, %c0_i32_0 : i32, i32
  }
  func.func @transform_6(%arg0: i32) -> (i32, i32) {
    %c0_i32 = arith.constant 0 : i32
    %c0_i32_0 = arith.constant 0 : i32
    %c0_i32_1 = arith.constant 0 : i32
    return %c0_i32, %c0_i32_0 : i32, i32
  }
  func.func @transform_7(%arg0: i32) -> (i32, i32) {
    %c0_i32 = arith.constant 0 : i32
    %c0_i32_0 = arith.constant 0 : i32
    return %arg0, %c0_i32 : i32, i32
  }
}

</mosaic_0001>

<llo_original>
// kernel: tpu_custom_call.1
$region0: #{tpu_custom_call.1}
  #allocation0 [shape = 'u32[]', space=smem, size = 0x4, offset = 0x4, fixed_abs, tag = 'smem constant byte address 0x4 - core index']
  #allocation1 [shape = 'u32[144,128]{1,0:T(1,128)}', space=vmem, size = 0x12000, scoped, tag = 'internal scratch']
  #allocation2 [shape = 'f32[1,1]{1,0:T(1,128)S(1)}', space=vmem, size = 0x200, scoped, tag = 'scoped memory for tpu_custom_call.1']
  %s0 = inlined_call_operand.hbm [shape: f32[8,8], index: 0, kind: input, shape index: {}]
  %s1 = inlined_call_operand.hbm [shape: f32[8,896], index: 1, kind: input, shape index: {}]
  %s2 = inlined_call_operand.vmem [shape: f32[1,512], index: 2, kind: input, shape index: {}]
  %s3 = inlined_call_operand.hbm [shape: bf16[512,384], index: 3, kind: input, shape index: {}]
  %s4 = inlined_call_operand.vmem [shape: f32[1,384], index: 4, kind: input, shape index: {}]
  %s5 = inlined_call_operand.vmem [shape: f32[1,384], index: 5, kind: input, shape index: {}]
  %s6 = inlined_call_operand.<no memory space> [shape: f32[1,1], index: 6, kind: input, shape index: {}]
  %s7 = inlined_call_operand.vmem [shape: f32[8,1], index: 7, kind: output, shape index: {}]
  %s8 = sld [smem:[#allocation0]]
  $region50: #{tpu_custom_call.1} parent=0
    _
  %s10 = ssub.s32 1, %s8
  %s11 = scalar_select 0, %s10, %s8
  %v12 = vstv %s6
  %13 = vst [vmem:[#allocation2] sm:$0x1] %v12
  $region1: #{tpu_custom_call.1} parent=0
    #allocation3 [shape = 'u8[4096]{0}', space=vmem, size = 0x1000, scoped, tag = 'input window, operand 0, single buffered']
    #allocation4 [shape = 's32[1]{0}', space=sflag, size = 0x4, scoped, tag = 'scoped memory for tpu_custom_call.1']
    #allocation5 [shape = 'u8[28672]{0}', space=vmem, size = 0x7000, scoped, tag = 'input window, operand 1, single buffered']
    #allocation6 [shape = 's32[1]{0}', space=sflag, size = 0x4, scoped, tag = 'scoped memory for tpu_custom_call.1']
    #allocation7 [shape = 'u8[393216]{0}', space=vmem, size = 0x60000, scoped, tag = 'input window, operand 3, single buffered']
    %14 = vsyncpa [#allocation4], 0
    %15 = vsyncpa [#allocation6], 0
    // Predicated region
    $region2: #{tpu_custom_call.1} parent=1 // pred_check
      _
    $region3: #{tpu_custom_call.1} parent=1 // pred_check_branch
      %17 = sbr.rel (0) target = $region5
    $region4: #{tpu_custom_call.1} parent=1 // pred_region
      %s19 = ssub.s32 128, 128
      %20 = vsyncadd [#allocation4], %s19
      %s22 = sshll.u32 [#allocation3], 4
      %s23 = int_to_ptr.vmem [resolvable:$true] %s22
      %25 = dma.hbm_to_vmem [thread:$0]  %s0, 128, %s23, [#allocation4]
    $region5: #{tpu_custom_call.1} parent=1 // pred_fallthru
      _
    // Predicated region
    $region6: #{tpu_custom_call.1} parent=1 // pred_check
      _
    $region7: #{tpu_custom_call.1} parent=1 // pred_check_branch
      %27 = sbr.rel (0) target = $region9
    $region8: #{tpu_custom_call.1} parent=1 // pred_region
      %s29 = ssub.s32 896, 896
      %30 = vsyncadd [#allocation6], %s29
      %s32 = sshll.u32 [#allocation5], 4
      %s33 = int_to_ptr.vmem [resolvable:$true] %s32
      %35 = dma.hbm_to_vmem [thread:$0]  %s1, 896, %s33, [#allocation6]
    $region9: #{tpu_custom_call.1} parent=1 // pred_fallthru
      _
    // Predicated region
    $region10: #{tpu_custom_call.1} parent=1 // pred_check
      _
    $region11: #{tpu_custom_call.1} parent=1 // pred_check_branch
      %37 = sbr.rel (0) target = $region13
    $region12: #{tpu_custom_call.1} parent=1 // pred_region
      _
    $region13: #{tpu_custom_call.1} parent=1 // pred_fallthru
      _
    // Predicated region
    $region14: #{tpu_custom_call.1} parent=1 // pred_check
      _
    $region15: #{tpu_custom_call.1} parent=1 // pred_check_branch
      %39 = sbr.rel (0) target = $region17
    $region16: #{tpu_custom_call.1} parent=1 // pred_region
      %s41 = ssub.s32 12288, 12288
      %42 = vsyncadd [#allocation6], %s41
      %s43 = sshll.u32 [#allocation7], 4
      %s44 = int_to_ptr.vmem [resolvable:$true] %s43
      %49 = dma.hbm_to_vmem [thread:$0]  %s3, 12288, %s44, [#allocation6], 192, 192, 12
    $region17: #{tpu_custom_call.1} parent=1 // pred_fallthru
      _
    // Predicated region
    $region18: #{tpu_custom_call.1} parent=1 // pred_check
      _
    $region19: #{tpu_custom_call.1} parent=1 // pred_check_branch
      %51 = sbr.rel (0) target = $region21
    $region20: #{tpu_custom_call.1} parent=1 // pred_region
      _
    $region21: #{tpu_custom_call.1} parent=1 // pred_fallthru
      _
    // Predicated region
    $region22: #{tpu_custom_call.1} parent=1 // pred_check
      _
    $region23: #{tpu_custom_call.1} parent=1 // pred_check_branch
      %53 = sbr.rel (0) target = $region25
    $region24: #{tpu_custom_call.1} parent=1 // pred_region
      _
    $region25: #{tpu_custom_call.1} parent=1 // pred_fallthru
      _
    // Predicated region
    $region26: #{tpu_custom_call.1} parent=1 // pred_check
      _
    $region27: #{tpu_custom_call.1} parent=1 // pred_check_branch
      %55 = sbr.rel (0) target = $region29
    $region28: #{tpu_custom_call.1} parent=1 // pred_region
      _
    $region29: #{tpu_custom_call.1} parent=1 // pred_fallthru
      _
    // Predicated region
    $region30: #{tpu_custom_call.1} parent=1 // pred_check
      _
    $region31: #{tpu_custom_call.1} parent=1 // pred_check_branch
      %57 = sbr.rel (0) target = $region33
    $region32: #{tpu_custom_call.1} parent=1 // pred_region
      %58 = dma.done [#allocation4], 128
    $region33: #{tpu_custom_call.1} parent=1 // pred_fallthru
      _
    // Predicated region
    $region34: #{tpu_custom_call.1} parent=1 // pred_check
      _
    $region35: #{tpu_custom_call.1} parent=1 // pred_check_branch
      %60 = sbr.rel (0) target = $region37
    $region36: #{tpu_custom_call.1} parent=1 // pred_region
      %61 = dma.done [#allocation6], 896
    $region37: #{tpu_custom_call.1} parent=1 // pred_fallthru
      _
    // Predicated region
    $region38: #{tpu_custom_call.1} parent=1 // pred_check
      _
    $region39: #{tpu_custom_call.1} parent=1 // pred_check_branch
      %63 = sbr.rel (0) target = $region41
    $region40: #{tpu_custom_call.1} parent=1 // pred_region
      %64 = dma.done [#allocation6], 12288
    $region41: #{tpu_custom_call.1} parent=1 // pred_fallthru
      _
    %v66 = vld [vmem:[#allocation3] sm:$0xff]
    %v67 = vld [vmem:[#allocation5] sm:$0xff]
    %v68 = vld [vmem:[#allocation5 + $0x8] sm:$0xff]
    %v69 = vld [vmem:[#allocation5 + $0x10] sm:$0xff]
    %v70 = vld [vmem:[#allocation5 + $0x18] sm:$0xff]
    %v71 = vld [vmem:[#allocation5 + $0x20] sm:$0xff]
    %v72 = vld [vmem:[#allocation5 + $0x28] sm:$0xff]
    %v73 = vld [vmem:[#allocation5 + $0x30] sm:$0xff]
    %vm74 = vcmask 64512
    %v76 = vsel %vm74, %v66, 0
    %78 = vmatprep.subr.mxu0 0.0
    %79 = vmatpush1.msra.mxu0 0.0
    %80 = vmatprep.subr.mxu0 0.0
    %81 = vmatpush1.msra.mxu0 0.0
    %82 = vmatprep.subr.mxu0 0.0
    %83 = vmatpush1.msra.mxu0 0.0
    %84 = vmatprep.subr.mxu0 0.0
    %85 = vmatpush1.msra.mxu0 0.0
    %86 = vmatprep.subr.mxu0 0.0
    %87 = vmatpush1.msra.mxu0 0.0
    %88 = vmatprep.subr.mxu0 0.0
    %89 = vmatpush1.msra.mxu0 0.0
    %90 = vmatprep.subr.mxu0 0.0
    %91 = vmatpush1.msra.mxu0 0.0
    %92 = vmatprep.subr.mxu0 0.0
    %93 = vmatpush1.msra.mxu0 0.0
    %94 = vmatprep.subr.mxu0 0.0
    %95 = vmatpush1.msra.mxu0 0.0
    %96 = vmatprep.subr.mxu0 0.0
    %97 = vmatpush1.msra.mxu0 0.0
    %98 = vmatprep.subr.mxu0 0.0
    %99 = vmatpush1.msra.mxu0 0.0
    %100 = vmatprep.subr.mxu0 0.0
    %101 = vmatpush1.msra.mxu0 0.0
    %102 = vmatprep.subr.mxu0 0.0
    %103 = vmatpush1.msra.mxu0 0.0
    %104 = vmatprep.subr.mxu0 0.0
    %105 = vmatpush1.msra.mxu0 0.0
    %106 = vmatprep.subr.mxu0 0.0
    %107 = vmatpush1.msra.mxu0 0.0
    %108 = vmatprep.subr.mxu0 %v68
    %109 = vmatpush1.msra.mxu0 %v67
    %110 = vmatprep.subr.mxu0 0.0
    %111 = vmatpush2.msra.mxu0 0.0
    %112 = vmatprep.subr.mxu0 0.0
    %113 = vmatpush2.msra.mxu0 0.0
    %114 = vmatprep.subr.mxu0 0.0
    %115 = vmatpush2.msra.mxu0 0.0
    %116 = vmatprep.subr.mxu0 0.0
    %117 = vmatpush2.msra.mxu0 0.0
    %118 = vmatprep.subr.mxu0 0.0
    %119 = vmatpush2.msra.mxu0 0.0
    %120 = vmatprep.subr.mxu0 0.0
    %121 = vmatpush2.msra.mxu0 0.0
    %122 = vmatprep.subr.mxu0 0.0
    %123 = vmatpush2.msra.mxu0 0.0
    %124 = vmatprep.subr.mxu0 0.0
    %125 = vmatpush2.msra.mxu0 0.0
    %126 = vmatprep.subr.mxu0 0.0
    %127 = vmatpush2.msra.mxu0 0.0
    %128 = vmatprep.subr.mxu0 0.0
    %129 = vmatpush2.msra.mxu0 0.0
    %130 = vmatprep.subr.mxu0 0.0
    %131 = vmatpush2.msra.mxu0 0.0
    %132 = vmatprep.subr.mxu0 0.0
    %133 = vmatpush2.msra.mxu0 0.0
    %134 = vmatprep.subr.mxu0 0.0
    %135 = vmatpush2.msra.mxu0 0.0
    %136 = vmatprep.subr.mxu0 0.0
    %137 = vmatpush2.msra.mxu0 0.0
    %138 = vmatprep.subr.mxu0 0.0
    %139 = vmatpush2.msra.mxu0 0.0
    %140 = vmatprep.subr.mxu0 0.0
    %141 = vmatpush2.msra.mxu0 0.0
    %142 = vmatprep.mubr.f32.mxu0 0.0
    %143 = vmatmul.mubr.f32.gmra.mxu0 %v76
    %v144 = vpop.f32.mrf.mxu0
    %v145 = vadd.f32 0.0, %v144
    %v146 = vpop.f32.mrf.mxu0
    %v147 = vadd.f32 0.0, %v146
    %148 = vdwg.mxu0
    %149 = vmatprep.subr.mxu0 0.0
    %150 = vmatpush1.msra.mxu0 0.0
    %151 = vmatprep.subr.mxu0 0.0
    %152 = vmatpush1.msra.mxu0 0.0
    %153 = vmatprep.subr.mxu0 0.0
    %154 = vmatpush1.msra.mxu0 0.0
    %155 = vmatprep.subr.mxu0 0.0
    %156 = vmatpush1.msra.mxu0 0.0
    %157 = vmatprep.subr.mxu0 0.0
    %158 = vmatpush1.msra.mxu0 0.0
    %159 = vmatprep.subr.mxu0 0.0
    %160 = vmatpush1.msra.mxu0 0.0
    %161 = vmatprep.subr.mxu0 0.0
    %162 = vmatpush1.msra.mxu0 0.0
    %163 = vmatprep.subr.mxu0 0.0
    %164 = vmatpush1.msra.mxu0 0.0
    %165 = vmatprep.subr.mxu0 0.0
    %166 = vmatpush1.msra.mxu0 0.0
    %167 = vmatprep.subr.mxu0 0.0
    %168 = vmatpush1.msra.mxu0 0.0
    %169 = vmatprep.subr.mxu0 0.0
    %170 = vmatpush1.msra.mxu0 0.0
    %171 = vmatprep.subr.mxu0 0.0
    %172 = vmatpush1.msra.mxu0 0.0
    %173 = vmatprep.subr.mxu0 0.0
    %174 = vmatpush1.msra.mxu0 0.0
    %175 = vmatprep.subr.mxu0 0.0
    %176 = vmatpush1.msra.mxu0 0.0
    %177 = vmatprep.subr.mxu0 0.0
    %178 = vmatpush1.msra.mxu0 0.0
    %179 = vmatprep.subr.mxu0 %v70
    %180 = vmatpush1.msra.mxu0 %v69
    %181 = vmatprep.subr.mxu0 0.0
    %182 = vmatpush2.msra.mxu0 0.0
    %183 = vmatprep.subr.mxu0 0.0
    %184 = vmatpush2.msra.mxu0 0.0
    %185 = vmatprep.subr.mxu0 0.0
    %186 = vmatpush2.msra.mxu0 0.0
    %187 = vmatprep.subr.mxu0 0.0
    %188 = vmatpush2.msra.mxu0 0.0
    %189 = vmatprep.subr.mxu0 0.0
    %190 = vmatpush2.msra.mxu0 0.0
    %191 = vmatprep.subr.mxu0 0.0
    %192 = vmatpush2.msra.mxu0 0.0
    %193 = vmatprep.subr.mxu0 0.0
    %194 = vmatpush2.msra.mxu0 0.0
    %195 = vmatprep.subr.mxu0 0.0
    %196 = vmatpush2.msra.mxu0 0.0
    %197 = vmatprep.subr.mxu0 0.0
    %198 = vmatpush2.msra.mxu0 0.0
    %199 = vmatprep.subr.mxu0 0.0
    %200 = vmatpush2.msra.mxu0 0.0
    %201 = vmatprep.subr.mxu0 0.0
    %202 = vmatpush2.msra.mxu0 0.0
    %203 = vmatprep.subr.mxu0 0.0
    %204 = vmatpush2.msra.mxu0 0.0
    %205 = vmatprep.subr.mxu0 0.0
    %206 = vmatpush2.msra.mxu0 0.0
    %207 = vmatprep.subr.mxu0 0.0
    %208 = vmatpush2.msra.mxu0 0.0
    %209 = vmatprep.subr.mxu0 0.0
    %210 = vmatpush2.msra.mxu0 0.0
    %211 = vmatprep.subr.mxu0 0.0
    %212 = vmatpush2.msra.mxu0 0.0
    %213 = vmatprep.mubr.f32.mxu0 0.0
    %214 = vmatmul.mubr.f32.gmra.mxu0 %v76
    %v215 = vpop.f32.mrf.mxu0
    %v216 = vadd.f32 0.0, %v215
    %v217 = vpop.f32.mrf.mxu0
    %v218 = vadd.f32 0.0, %v217
    %219 = vdwg.mxu0
    %220 = vmatprep.subr.mxu0 0.0
    %221 = vmatpush1.msra.mxu0 0.0
    %222 = vmatprep.subr.mxu0 0.0
    %223 = vmatpush1.msra.mxu0 0.0
    %224 = vmatprep.subr.mxu0 0.0
    %225 = vmatpush1.msra.mxu0 0.0
    %226 = vmatprep.subr.mxu0 0.0
    %227 = vmatpush1.msra.mxu0 0.0
    %228 = vmatprep.subr.mxu0 0.0
    %229 = vmatpush1.msra.mxu0 0.0
    %230 = vmatprep.subr.mxu0 0.0
    %231 = vmatpush1.msra.mxu0 0.0
    %232 = vmatprep.subr.mxu0 0.0
    %233 = vmatpush1.msra.mxu0 0.0
    %234 = vmatprep.subr.mxu0 0.0
    %235 = vmatpush1.msra.mxu0 0.0
    %236 = vmatprep.subr.mxu0 0.0
    %237 = vmatpush1.msra.mxu0 0.0
    %238 = vmatprep.subr.mxu0 0.0
    %239 = vmatpush1.msra.mxu0 0.0
    %240 = vmatprep.subr.mxu0 0.0
    %241 = vmatpush1.msra.mxu0 0.0
    %242 = vmatprep.subr.mxu0 0.0
    %243 = vmatpush1.msra.mxu0 0.0
    %244 = vmatprep.subr.mxu0 0.0
    %245 = vmatpush1.msra.mxu0 0.0
    %246 = vmatprep.subr.mxu0 0.0
    %247 = vmatpush1.msra.mxu0 0.0
    %248 = vmatprep.subr.mxu0 0.0
    %249 = vmatpush1.msra.mxu0 0.0
    %250 = vmatprep.subr.mxu0 %v72
    %251 = vmatpush1.msra.mxu0 %v71
    %252 = vmatprep.subr.mxu0 0.0
    %253 = vmatpush2.msra.mxu0 0.0
    %254 = vmatprep.subr.mxu0 0.0
    %255 = vmatpush2.msra.mxu0 0.0
    %256 = vmatprep.subr.mxu0 0.0
    %257 = vmatpush2.msra.mxu0 0.0
    %258 = vmatprep.subr.mxu0 0.0
    %259 = vmatpush2.msra.mxu0 0.0
    %260 = vmatprep.subr.mxu0 0.0
    %261 = vmatpush2.msra.mxu0 0.0
    %262 = vmatprep.subr.mxu0 0.0
    %263 = vmatpush2.msra.mxu0 0.0
    %264 = vmatprep.subr.mxu0 0.0
    %265 = vmatpush2.msra.mxu0 0.0
    %266 = vmatprep.subr.mxu0 0.0
    %267 = vmatpush2.msra.mxu0 0.0
    %268 = vmatprep.subr.mxu0 0.0
    %269 = vmatpush2.msra.mxu0 0.0
    %270 = vmatprep.subr.mxu0 0.0
    %271 = vmatpush2.msra.mxu0 0.0
    %272 = vmatprep.subr.mxu0 0.0
    %273 = vmatpush2.msra.mxu0 0.0
    %274 = vmatprep.subr.mxu0 0.0
    %275 = vmatpush2.msra.mxu0 0.0
    %276 = vmatprep.subr.mxu0 0.0
    %277 = vmatpush2.msra.mxu0 0.0
    %278 = vmatprep.subr.mxu0 0.0
    %279 = vmatpush2.msra.mxu0 0.0
    %280 = vmatprep.subr.mxu0 0.0
    %281 = vmatpush2.msra.mxu0 0.0
    %282 = vmatprep.subr.mxu0 0.0
    %283 = vmatpush2.msra.mxu0 0.0
    %284 = vmatprep.mubr.f32.mxu0 0.0
    %285 = vmatmul.mubr.f32.gmra.mxu0 %v76
    %v286 = vpop.f32.mrf.mxu0
    %v287 = vadd.f32 0.0, %v286
    %v288 = vpop.f32.mrf.mxu0
    %v289 = vadd.f32 0.0, %v288
    %290 = vdwg.mxu0
    %291 = vmatprep.subr.mxu0 0.0
    %292 = vmatpush1.msra.mxu0 0.0
    %293 = vmatprep.subr.mxu0 0.0
    %294 = vmatpush1.msra.mxu0 0.0
    %295 = vmatprep.subr.mxu0 0.0
    %296 = vmatpush1.msra.mxu0 0.0
    %297 = vmatprep.subr.mxu0 0.0
    %298 = vmatpush1.msra.mxu0 0.0
    %299 = vmatprep.subr.mxu0 0.0
    %300 = vmatpush1.msra.mxu0 0.0
    %301 = vmatprep.subr.mxu0 0.0
    %302 = vmatpush1.msra.mxu0 0.0
    %303 = vmatprep.subr.mxu0 0.0
    %304 = vmatpush1.msra.mxu0 0.0
    %305 = vmatprep.subr.mxu0 0.0
    %306 = vmatpush1.msra.mxu0 0.0
    %307 = vmatprep.subr.mxu0 0.0
    %308 = vmatpush1.msra.mxu0 0.0
    %309 = vmatprep.subr.mxu0 0.0
    %310 = vmatpush1.msra.mxu0 0.0
    %311 = vmatprep.subr.mxu0 0.0
    %312 = vmatpush1.msra.mxu0 0.0
    %313 = vmatprep.subr.mxu0 0.0
    %314 = vmatpush1.msra.mxu0 0.0
    %315 = vmatprep.subr.mxu0 0.0
    %316 = vmatpush1.msra.mxu0 0.0
    %317 = vmatprep.subr.mxu0 0.0
    %318 = vmatpush1.msra.mxu0 0.0
    %319 = vmatprep.subr.mxu0 0.0
    %320 = vmatpush1.msra.mxu0 0.0
    %321 = vmatprep.subr.mxu0 0.0
    %322 = vmatpush1.msra.mxu0 %v73
    %323 = vmatprep.subr.mxu0 0.0
    %324 = vmatpush2.msra.mxu0 0.0
    %325 = vmatprep.subr.mxu0 0.0
    %326 = vmatpush2.msra.mxu0 0.0
    %327 = vmatprep.subr.mxu0 0.0
    %328 = vmatpush2.msra.mxu0 0.0
    %329 = vmatprep.subr.mxu0 0.0
    %330 = vmatpush2.msra.mxu0 0.0
    %331 = vmatprep.subr.mxu0 0.0
    %332 = vmatpush2.msra.mxu0 0.0
    %333 = vmatprep.subr.mxu0 0.0
    %334 = vmatpush2.msra.mxu0 0.0
    %335 = vmatprep.subr.mxu0 0.0
    %336 = vmatpush2.msra.mxu0 0.0
    %337 = vmatprep.subr.mxu0 0.0
    %338 = vmatpush2.msra.mxu0 0.0
    %339 = vmatprep.subr.mxu0 0.0
    %340 = vmatpush2.msra.mxu0 0.0
    %341 = vmatprep.subr.mxu0 0.0
    %342 = vmatpush2.msra.mxu0 0.0
    %343 = vmatprep.subr.mxu0 0.0
    %344 = vmatpush2.msra.mxu0 0.0
    %345 = vmatprep.subr.mxu0 0.0
    %346 = vmatpush2.msra.mxu0 0.0
    %347 = vmatprep.subr.mxu0 0.0
    %348 = vmatpush2.msra.mxu0 0.0
    %349 = vmatprep.subr.mxu0 0.0
    %350 = vmatpush2.msra.mxu0 0.0
    %351 = vmatprep.subr.mxu0 0.0
    %352 = vmatpush2.msra.mxu0 0.0
    %353 = vmatprep.subr.mxu0 0.0
    %354 = vmatpush2.msra.mxu0 0.0
    %355 = vmatprep.mubr.f32.mxu0 0.0
    %356 = vmatmul.mubr.f32.gmra.mxu0 %v76
    %v357 = vpop.f32.mrf.mxu0
    %v358 = vadd.f32 0.0, %v357
    %v359 = vpop.f32.mrf.mxu0
    %360 = vdwg.mxu0
    %v361 = vld [vmem:[%s2] sm:$0xf]
    %v363 = vlaneseq
    %v364 = vshrl.u32 %v363, 7
    %v365 = vsub.s32 0, %v364
    %v366 = vrot.slane %v361, %v365
    %v367 = vlaneseq
    %v368 = vshrl.u32 %v367, 7
    %v369 = vsub.s32 1, %v368
    %v370 = vrot.slane %v361, %v369
    %v371 = vlaneseq
    %v372 = vshrl.u32 %v371, 7
    %v373 = vsub.s32 2, %v372
    %v374 = vrot.slane %v361, %v373
    %v375 = vlaneseq
    %v376 = vshrl.u32 %v375, 7
    %v377 = vsub.s32 3, %v376
    %v378 = vrot.slane %v361, %v377
    %v383 = vadd.f32 %v145, %v366
    %v384 = vadd.f32 %v147, %v370
    %v385 = vadd.f32 %v216, %v374
    %v386 = vadd.f32 %v218, %v378
    %v387 = vmax.f32 %v383, 0.0
    %v388 = vmax.f32 %v384, 0.0
    %v389 = vmax.f32 %v385, 0.0
    %v390 = vmax.f32 %v386, 0.0
    %v391 = vpack.c.bf16 %v387, %v387
    %v392 = vpack.c.bf16 %v388, %v388
    %v393 = vpack.c.bf16 %v389, %v389
    %v394 = vpack.c.bf16 %v390, %v390
    %v395 = vld [vmem:[#allocation7] sm:$0xff]
    %v396 = vld [vmem:[#allocation7 + $0x8] sm:$0xf]
    %v397 = vld [vmem:[#allocation7 + $0xc] sm:$0xff]
    %v398 = vld [vmem:[#allocation7 + $0x14] sm:$0xf]
    %v399 = vld [vmem:[#allocation7 + $0x18] sm:$0xff]
    %v400 = vld [vmem:[#allocation7 + $0x20] sm:$0xf]
    %v401 = vld [vmem:[#allocation7 + $0x24] sm:$0xff]
    %v402 = vld [vmem:[#allocation7 + $0x2c] sm:$0xf]
    %v403 = vld [vmem:[#allocation7 + $0x30] sm:$0xff]
    %v404 = vld [vmem:[#allocation7 + $0x38] sm:$0xf]
    %v405 = vld [vmem:[#allocation7 + $0x3c] sm:$0xff]
    %v406 = vld [vmem:[#allocation7 + $0x44] sm:$0xf]
    %v407 = vld [vmem:[#allocation7 + $0x48] sm:$0xff]
    %v408 = vld [vmem:[#allocation7 + $0x50] sm:$0xf]
    %v409 = vld [vmem:[#allocation7 + $0x54] sm:$0xff]
    %v410 = vld [vmem:[#allocation7 + $0x5c] sm:$0xf]
    %v411 = vld [vmem:[#allocation7 + $0x60] sm:$0xff]
    %v412 = vld [vmem:[#allocation7 + $0x68] sm:$0xf]
    %v413 = vld [vmem:[#allocation7 + $0x6c] sm:$0xff]
    %v414 = vld [vmem:[#allocation7 + $0x74] sm:$0xf]
    %v415 = vld [vmem:[#allocation7 + $0x78] sm:$0xff]
    %v416 = vld [vmem:[#allocation7 + $0x80] sm:$0xf]
    %v417 = vld [vmem:[#allocation7 + $0x84] sm:$0xff]
    %v418 = vld [vmem:[#allocation7 + $0x8c] sm:$0xf]
    %v419 = vld [vmem:[#allocation7 + $0x90] sm:$0xff]
    %v420 = vld [vmem:[#allocation7 + $0x98] sm:$0xf]
    %v421 = vld [vmem:[#allocation7 + $0x9c] sm:$0xff]
    %v422 = vld [vmem:[#allocation7 + $0xa4] sm:$0xf]
    %v423 = vld [vmem:[#allocation7 + $0xa8] sm:$0xff]
    %v424 = vld [vmem:[#allocation7 + $0xb0] sm:$0xf]
    %v425 = vld [vmem:[#allocation7 + $0xb4] sm:$0xff]
    %v426 = vld [vmem:[#allocation7 + $0xbc] sm:$0xf]
    %v427 = vld [vmem:[#allocation7 + $0xc0] sm:$0xff]
    %v428 = vld [vmem:[#allocation7 + $0xc8] sm:$0xf]
    %v429 = vld [vmem:[#allocation7 + $0xcc] sm:$0xff]
    %v430 = vld [vmem:[#allocation7 + $0xd4] sm:$0xf]
    %v431 = vld [vmem:[#allocation7 + $0xd8] sm:$0xff]
    %v432 = vld [vmem:[#allocation7 + $0xe0] sm:$0xf]
    %v433 = vld [vmem:[#allocation7 + $0xe4] sm:$0xff]
    %v434 = vld [vmem:[#allocation7 + $0xec] sm:$0xf]
    %v435 = vld [vmem:[#allocation7 + $0xf0] sm:$0xff]
    %v436 = vld [vmem:[#allocation7 + $0xf8] sm:$0xf]
    %v437 = vld [vmem:[#allocation7 + $0xfc] sm:$0xff]
    %v438 = vld [vmem:[#allocation7 + $0x104] sm:$0xf]
    %v439 = vld [vmem:[#allocation7 + $0x108] sm:$0xff]
    %v440 = vld [vmem:[#allocation7 + $0x110] sm:$0xf]
    %v441 = vld [vmem:[#allocation7 + $0x114] sm:$0xff]
    %v442 = vld [vmem:[#allocation7 + $0x11c] sm:$0xf]
    %v443 = vld [vmem:[#allocation7 + $0x120] sm:$0xff]
    %v444 = vld [vmem:[#allocation7 + $0x128] sm:$0xf]
    %v445 = vld [vmem:[#allocation7 + $0x12c] sm:$0xff]
    %v446 = vld [vmem:[#allocation7 + $0x134] sm:$0xf]
    %v447 = vld [vmem:[#allocation7 + $0x138] sm:$0xff]
    %v448 = vld [vmem:[#allocation7 + $0x140] sm:$0xf]
    %v449 = vld [vmem:[#allocation7 + $0x144] sm:$0xff]
    %v450 = vld [vmem:[#allocation7 + $0x14c] sm:$0xf]
    %v451 = vld [vmem:[#allocation7 + $0x150] sm:$0xff]
    %v452 = vld [vmem:[#allocation7 + $0x158] sm:$0xf]
    %v453 = vld [vmem:[#allocation7 + $0x15c] sm:$0xff]
    %v454 = vld [vmem:[#allocation7 + $0x164] sm:$0xf]
    %v455 = vld [vmem:[#allocation7 + $0x168] sm:$0xff]
    %v456 = vld [vmem:[#allocation7 + $0x170] sm:$0xf]
    %v457 = vld [vmem:[#allocation7 + $0x174] sm:$0xff]
    %v458 = vld [vmem:[#allocation7 + $0x17c] sm:$0xf]
    %v459 = vld [vmem:[#allocation7 + $0x180] sm:$0xff]
    %v460 = vld [vmem:[#allocation7 + $0x188] sm:$0xf]
    %v461 = vld [vmem:[#allocation7 + $0x18c] sm:$0xff]
    %v462 = vld [vmem:[#allocation7 + $0x194] sm:$0xf]
    %v463 = vld [vmem:[#allocation7 + $0x198] sm:$0xff]
    %v464 = vld [vmem:[#allocation7 + $0x1a0] sm:$0xf]
    %v465 = vld [vmem:[#allocation7 + $0x1a4] sm:$0xff]
    %v466 = vld [vmem:[#allocation7 + $0x1ac] sm:$0xf]
    %v467 = vld [vmem:[#allocation7 + $0x1b0] sm:$0xff]
    %v468 = vld [vmem:[#allocation7 + $0x1b8] sm:$0xf]
    %v469 = vld [vmem:[#allocation7 + $0x1bc] sm:$0xff]
    %v470 = vld [vmem:[#allocation7 + $0x1c4] sm:$0xf]
    %v471 = vld [vmem:[#allocation7 + $0x1c8] sm:$0xff]
    %v472 = vld [vmem:[#allocation7 + $0x1d0] sm:$0xf]
    %v473 = vld [vmem:[#allocation7 + $0x1d4] sm:$0xff]
    %v474 = vld [vmem:[#allocation7 + $0x1dc] sm:$0xf]
    %v475 = vld [vmem:[#allocation7 + $0x1e0] sm:$0xff]
    %v476 = vld [vmem:[#allocation7 + $0x1e8] sm:$0xf]
    %v477 = vld [vmem:[#allocation7 + $0x1ec] sm:$0xff]
    %v478 = vld [vmem:[#allocation7 + $0x1f4] sm:$0xf]
    %v479 = vld [vmem:[#allocation7 + $0x1f8] sm:$0xff]
    %v480 = vld [vmem:[#allocation7 + $0x200] sm:$0xf]
    %v481 = vld [vmem:[#allocation7 + $0x204] sm:$0xff]
    %v482 = vld [vmem:[#allocation7 + $0x20c] sm:$0xf]
    %v483 = vld [vmem:[#allocation7 + $0x210] sm:$0xff]
    %v484 = vld [vmem:[#allocation7 + $0x218] sm:$0xf]
    %v485 = vld [vmem:[#allocation7 + $0x21c] sm:$0xff]
    %v486 = vld [vmem:[#allocation7 + $0x224] sm:$0xf]
    %v487 = vld [vmem:[#allocation7 + $0x228] sm:$0xff]
    %v488 = vld [vmem:[#allocation7 + $0x230] sm:$0xf]
    %v489 = vld [vmem:[#allocation7 + $0x234] sm:$0xff]
    %v490 = vld [vmem:[#allocation7 + $0x23c] sm:$0xf]
    %v491 = vld [vmem:[#allocation7 + $0x240] sm:$0xff]
    %v492 = vld [vmem:[#allocation7 + $0x248] sm:$0xf]
    %v493 = vld [vmem:[#allocation7 + $0x24c] sm:$0xff]
    %v494 = vld [vmem:[#allocation7 + $0x254] sm:$0xf]
    %v495 = vld [vmem:[#allocation7 + $0x258] sm:$0xff]
    %v496 = vld [vmem:[#allocation7 + $0x260] sm:$0xf]
    %v497 = vld [vmem:[#allocation7 + $0x264] sm:$0xff]
    %v498 = vld [vmem:[#allocation7 + $0x26c] sm:$0xf]
    %v499 = vld [vmem:[#allocation7 + $0x270] sm:$0xff]
    %v500 = vld [vmem:[#allocation7 + $0x278] sm:$0xf]
    %v501 = vld [vmem:[#allocation7 + $0x27c] sm:$0xff]
    %v502 = vld [vmem:[#allocation7 + $0x284] sm:$0xf]
    %v503 = vld [vmem:[#allocation7 + $0x288] sm:$0xff]
    %v504 = vld [vmem:[#allocation7 + $0x290] sm:$0xf]
    %v505 = vld [vmem:[#allocation7 + $0x294] sm:$0xff]
    %v506 = vld [vmem:[#allocation7 + $0x29c] sm:$0xf]
    %v507 = vld [vmem:[#allocation7 + $0x2a0] sm:$0xff]
    %v508 = vld [vmem:[#allocation7 + $0x2a8] sm:$0xf]
    %v509 = vld [vmem:[#allocation7 + $0x2ac] sm:$0xff]
    %v510 = vld [vmem:[#allocation7 + $0x2b4] sm:$0xf]
    %v511 = vld [vmem:[#allocation7 + $0x2b8] sm:$0xff]
    %v512 = vld [vmem:[#allocation7 + $0x2c0] sm:$0xf]
    %v513 = vld [vmem:[#allocation7 + $0x2c4] sm:$0xff]
    %v514 = vld [vmem:[#allocation7 + $0x2cc] sm:$0xf]
    %v515 = vld [vmem:[#allocation7 + $0x2d0] sm:$0xff]
    %v516 = vld [vmem:[#allocation7 + $0x2d8] sm:$0xf]
    %v517 = vld [vmem:[#allocation7 + $0x2dc] sm:$0xff]
    %v518 = vld [vmem:[#allocation7 + $0x2e4] sm:$0xf]
    %v519 = vld [vmem:[#allocation7 + $0x2e8] sm:$0xff]
    %v520 = vld [vmem:[#allocation7 + $0x2f0] sm:$0xf]
    %v521 = vld [vmem:[#allocation7 + $0x2f4] sm:$0xff]
    %v522 = vld [vmem:[#allocation7 + $0x2fc] sm:$0xf]
    %v651 = vunpack.c.l.b16 %v395
    %v652 = vunpack.c.h.b16 %v395
    %v653 = vunpack.c.l.b16 %v396
    %v654 = vunpack.c.l.b16 %v397
    %v655 = vunpack.c.h.b16 %v397
    %v656 = vunpack.c.l.b16 %v398
    %v657 = vunpack.c.l.b16 %v399
    %v658 = vunpack.c.h.b16 %v399
    %v659 = vunpack.c.l.b16 %v400
    %v660 = vunpack.c.l.b16 %v401
    %v661 = vunpack.c.h.b16 %v401
    %v662 = vunpack.c.l.b16 %v402
    %v663 = vunpack.c.l.b16 %v403
    %v664 = vunpack.c.h.b16 %v403
    %v665 = vunpack.c.l.b16 %v404
    %v666 = vunpack.c.l.b16 %v405
    %v667 = vunpack.c.h.b16 %v405
    %v668 = vunpack.c.l.b16 %v406
    %v669 = vunpack.c.l.b16 %v407
    %v670 = vunpack.c.h.b16 %v407
    %v671 = vunpack.c.l.b16 %v408
    %v672 = vunpack.c.l.b16 %v409
    %v673 = vunpack.c.h.b16 %v409
    %v674 = vunpack.c.l.b16 %v410
    %v675 = vunpack.c.l.b16 %v411
    %v676 = vunpack.c.h.b16 %v411
    %v677 = vunpack.c.l.b16 %v412
    %v678 = vunpack.c.l.b16 %v413
    %v679 = vunpack.c.h.b16 %v413
    %v680 = vunpack.c.l.b16 %v414
    %v681 = vunpack.c.l.b16 %v415
    %v682 = vunpack.c.h.b16 %v415
    %v683 = vunpack.c.l.b16 %v416
    %v684 = vunpack.c.l.b16 %v417
    %v685 = vunpack.c.h.b16 %v417
    %v686 = vunpack.c.l.b16 %v418
    %v687 = vunpack.c.l.b16 %v419
    %v688 = vunpack.c.h.b16 %v419
    %v689 = vunpack.c.l.b16 %v420
    %v690 = vunpack.c.l.b16 %v421
    %v691 = vunpack.c.h.b16 %v421
    %v692 = vunpack.c.l.b16 %v422
    %v693 = vunpack.c.l.b16 %v423
    %v694 = vunpack.c.h.b16 %v423
    %v695 = vunpack.c.l.b16 %v424
    %v696 = vunpack.c.l.b16 %v425
    %v697 = vunpack.c.h.b16 %v425
    %v698 = vunpack.c.l.b16 %v426
    %v699 = vunpack.c.l.b16 %v427
    %v700 = vunpack.c.h.b16 %v427
    %v701 = vunpack.c.l.b16 %v428
    %v702 = vunpack.c.l.b16 %v429
    %v703 = vunpack.c.h.b16 %v429
    %v704 = vunpack.c.l.b16 %v430
    %v705 = vunpack.c.l.b16 %v431
    %v706 = vunpack.c.h.b16 %v431
    %v707 = vunpack.c.l.b16 %v432
    %v708 = vunpack.c.l.b16 %v433
    %v709 = vunpack.c.h.b16 %v433
    %v710 = vunpack.c.l.b16 %v434
    %v711 = vunpack.c.l.b16 %v435
    %v712 = vunpack.c.h.b16 %v435
    %v713 = vunpack.c.l.b16 %v436
    %v714 = vunpack.c.l.b16 %v437
    %v715 = vunpack.c.h.b16 %v437
    %v716 = vunpack.c.l.b16 %v438
    %v717 = vunpack.c.l.b16 %v439
    %v718 = vunpack.c.h.b16 %v439
    %v719 = vunpack.c.l.b16 %v440
    %v720 = vunpack.c.l.b16 %v441
    %v721 = vunpack.c.h.b16 %v441
    %v722 = vunpack.c.l.b16 %v442
    %v723 = vunpack.c.l.b16 %v443
    %v724 = vunpack.c.h.b16 %v443
    %v725 = vunpack.c.l.b16 %v444
    %v726 = vunpack.c.l.b16 %v445
    %v727 = vunpack.c.h.b16 %v445
    %v728 = vunpack.c.l.b16 %v446
    %v729 = vunpack.c.l.b16 %v447
    %v730 = vunpack.c.h.b16 %v447
    %v731 = vunpack.c.l.b16 %v448
    %v732 = vunpack.c.l.b16 %v449
    %v733 = vunpack.c.h.b16 %v449
    %v734 = vunpack.c.l.b16 %v450
    %v735 = vunpack.c.l.b16 %v451
    %v736 = vunpack.c.h.b16 %v451
    %v737 = vunpack.c.l.b16 %v452
    %v738 = vunpack.c.l.b16 %v453
    %v739 = vunpack.c.h.b16 %v453
    %v740 = vunpack.c.l.b16 %v454
    %v741 = vunpack.c.l.b16 %v455
    %v742 = vunpack.c.h.b16 %v455
    %v743 = vunpack.c.l.b16 %v456
    %v744 = vunpack.c.l.b16 %v457
    %v745 = vunpack.c.h.b16 %v457
    %v746 = vunpack.c.l.b16 %v458
    %v747 = vunpack.c.l.b16 %v459
    %v748 = vunpack.c.h.b16 %v459
    %v749 = vunpack.c.l.b16 %v460
    %v750 = vunpack.c.l.b16 %v461
    %v751 = vunpack.c.h.b16 %v461
    %v752 = vunpack.c.l.b16 %v462
    %v753 = vunpack.c.l.b16 %v463
    %v754 = vunpack.c.h.b16 %v463
    %v755 = vunpack.c.l.b16 %v464
    %v756 = vunpack.c.l.b16 %v465
    %v757 = vunpack.c.h.b16 %v465
    %v758 = vunpack.c.l.b16 %v466
    %v759 = vunpack.c.l.b16 %v467
    %v760 = vunpack.c.h.b16 %v467
    %v761 = vunpack.c.l.b16 %v468
    %v762 = vunpack.c.l.b16 %v469
    %v763 = vunpack.c.h.b16 %v469
    %v764 = vunpack.c.l.b16 %v470
    %v765 = vunpack.c.l.b16 %v471
    %v766 = vunpack.c.h.b16 %v471
    %v767 = vunpack.c.l.b16 %v472
    %v768 = vunpack.c.l.b16 %v473
    %v769 = vunpack.c.h.b16 %v473
    %v770 = vunpack.c.l.b16 %v474
    %v771 = vunpack.c.l.b16 %v475
    %v772 = vunpack.c.h.b16 %v475
    %v773 = vunpack.c.l.b16 %v476
    %v774 = vunpack.c.l.b16 %v477
    %v775 = vunpack.c.h.b16 %v477
    %v776 = vunpack.c.l.b16 %v478
    %v777 = vunpack.c.l.b16 %v479
    %v778 = vunpack.c.h.b16 %v479
    %v779 = vunpack.c.l.b16 %v480
    %v780 = vunpack.c.l.b16 %v481
    %v781 = vunpack.c.h.b16 %v481
    %v782 = vunpack.c.l.b16 %v482
    %v783 = vunpack.c.l.b16 %v483
    %v784 = vunpack.c.h.b16 %v483
    %v785 = vunpack.c.l.b16 %v484
    %v786 = vunpack.c.l.b16 %v485
    %v787 = vunpack.c.h.b16 %v485
    %v788 = vunpack.c.l.b16 %v486
    %v789 = vunpack.c.l.b16 %v487
    %v790 = vunpack.c.h.b16 %v487
    %v791 = vunpack.c.l.b16 %v488
    %v792 = vunpack.c.l.b16 %v489
    %v793 = vunpack.c.h.b16 %v489
    %v794 = vunpack.c.l.b16 %v490
    %v795 = vunpack.c.l.b16 %v491
    %v796 = vunpack.c.h.b16 %v491
    %v797 = vunpack.c.l.b16 %v492
    %v798 = vunpack.c.l.b16 %v493
    %v799 = vunpack.c.h.b16 %v493
    %v800 = vunpack.c.l.b16 %v494
    %v801 = vunpack.c.l.b16 %v495
    %v802 = vunpack.c.h.b16 %v495
    %v803 = vunpack.c.l.b16 %v496
    %v804 = vunpack.c.l.b16 %v497
    %v805 = vunpack.c.h.b16 %v497
    %v806 = vunpack.c.l.b16 %v498
    %v807 = vunpack.c.l.b16 %v499
    %v808 = vunpack.c.h.b16 %v499
    %v809 = vunpack.c.l.b16 %v500
    %v810 = vunpack.c.l.b16 %v501
    %v811 = vunpack.c.h.b16 %v501
    %v812 = vunpack.c.l.b16 %v502
    %v813 = vunpack.c.l.b16 %v503
    %v814 = vunpack.c.h.b16 %v503
    %v815 = vunpack.c.l.b16 %v504
    %v816 = vunpack.c.l.b16 %v505
    %v817 = vunpack.c.h.b16 %v505
    %v818 = vunpack.c.l.b16 %v506
    %v819 = vunpack.c.l.b16 %v507
    %v820 = vunpack.c.h.b16 %v507
    %v821 = vunpack.c.l.b16 %v508
    %v822 = vunpack.c.l.b16 %v509
    %v823 = vunpack.c.h.b16 %v509
    %v824 = vunpack.c.l.b16 %v510
    %v825 = vunpack.c.l.b16 %v511
    %v826 = vunpack.c.h.b16 %v511
    %v827 = vunpack.c.l.b16 %v512
    %v828 = vunpack.c.l.b16 %v513
    %v829 = vunpack.c.h.b16 %v513
    %v830 = vunpack.c.l.b16 %v514
    %v831 = vunpack.c.l.b16 %v515
    %v832 = vunpack.c.h.b16 %v515
    %v833 = vunpack.c.l.b16 %v516
    %v834 = vunpack.c.l.b16 %v517
    %v835 = vunpack.c.h.b16 %v517
    %v836 = vunpack.c.l.b16 %v518
    %v837 = vunpack.c.l.b16 %v519
    %v838 = vunpack.c.h.b16 %v519
    %v839 = vunpack.c.l.b16 %v520
    %v840 = vunpack.c.l.b16 %v521
    %v841 = vunpack.c.h.b16 %v521
    %v842 = vunpack.c.l.b16 %v522
    %v843 = vpack.c.b16 %v654, %v651
    %v844 = vpack.c.b16 %v655, %v652
    %v845 = vpack.c.b16 %v656, %v653
    %v846 = vpack.c.b16 %v660, %v657
    %v847 = vpack.c.b16 %v661, %v658
    %v848 = vpack.c.b16 %v662, %v659
    %v849 = vpack.c.b16 %v666, %v663
    %v850 = vpack.c.b16 %v667, %v664
    %v851 = vpack.c.b16 %v668, %v665
    %v852 = vpack.c.b16 %v672, %v669
    %v853 = vpack.c.b16 %v673, %v670
    %v854 = vpack.c.b16 %v674, %v671
    %v855 = vpack.c.b16 %v678, %v675
    %v856 = vpack.c.b16 %v679, %v676
    %v857 = vpack.c.b16 %v680, %v677
    %v858 = vpack.c.b16 %v684, %v681
    %v859 = vpack.c.b16 %v685, %v682
    %v860 = vpack.c.b16 %v686, %v683
    %v861 = vpack.c.b16 %v690, %v687
    %v862 = vpack.c.b16 %v691, %v688
    %v863 = vpack.c.b16 %v692, %v689
    %v864 = vpack.c.b16 %v696, %v693
    %v865 = vpack.c.b16 %v697, %v694
    %v866 = vpack.c.b16 %v698, %v695
    %v867 = vpack.c.b16 %v702, %v699
    %v868 = vpack.c.b16 %v703, %v700
    %v869 = vpack.c.b16 %v704, %v701
    %v870 = vpack.c.b16 %v708, %v705
    %v871 = vpack.c.b16 %v709, %v706
    %v872 = vpack.c.b16 %v710, %v707
    %v873 = vpack.c.b16 %v714, %v711
    %v874 = vpack.c.b16 %v715, %v712
    %v875 = vpack.c.b16 %v716, %v713
    %v876 = vpack.c.b16 %v720, %v717
    %v877 = vpack.c.b16 %v721, %v718
    %v878 = vpack.c.b16 %v722, %v719
    %v879 = vpack.c.b16 %v726, %v723
    %v880 = vpack.c.b16 %v727, %v724
    %v881 = vpack.c.b16 %v728, %v725
    %v882 = vpack.c.b16 %v732, %v729
    %v883 = vpack.c.b16 %v733, %v730
    %v884 = vpack.c.b16 %v734, %v731
    %v885 = vpack.c.b16 %v738, %v735
    %v886 = vpack.c.b16 %v739, %v736
    %v887 = vpack.c.b16 %v740, %v737
    %v888 = vpack.c.b16 %v744, %v741
    %v889 = vpack.c.b16 %v745, %v742
    %v890 = vpack.c.b16 %v746, %v743
    %v891 = vpack.c.b16 %v750, %v747
    %v892 = vpack.c.b16 %v751, %v748
    %v893 = vpack.c.b16 %v752, %v749
    %v894 = vpack.c.b16 %v756, %v753
    %v895 = vpack.c.b16 %v757, %v754
    %v896 = vpack.c.b16 %v758, %v755
    %v897 = vpack.c.b16 %v762, %v759
    %v898 = vpack.c.b16 %v763, %v760
    %v899 = vpack.c.b16 %v764, %v761
    %v900 = vpack.c.b16 %v768, %v765
    %v901 = vpack.c.b16 %v769, %v766
    %v902 = vpack.c.b16 %v770, %v767
    %v903 = vpack.c.b16 %v774, %v771
    %v904 = vpack.c.b16 %v775, %v772
    %v905 = vpack.c.b16 %v776, %v773
    %v906 = vpack.c.b16 %v780, %v777
    %v907 = vpack.c.b16 %v781, %v778
    %v908 = vpack.c.b16 %v782, %v779
    %v909 = vpack.c.b16 %v786, %v783
    %v910 = vpack.c.b16 %v787, %v784
    %v911 = vpack.c.b16 %v788, %v785
    %v912 = vpack.c.b16 %v792, %v789
    %v913 = vpack.c.b16 %v793, %v790
    %v914 = vpack.c.b16 %v794, %v791
    %v915 = vpack.c.b16 %v798, %v795
    %v916 = vpack.c.b16 %v799, %v796
    %v917 = vpack.c.b16 %v800, %v797
    %v918 = vpack.c.b16 %v804, %v801
    %v919 = vpack.c.b16 %v805, %v802
    %v920 = vpack.c.b16 %v806, %v803
    %v921 = vpack.c.b16 %v810, %v807
    %v922 = vpack.c.b16 %v811, %v808
    %v923 = vpack.c.b16 %v812, %v809
    %v924 = vpack.c.b16 %v816, %v813
    %v925 = vpack.c.b16 %v817, %v814
    %v926 = vpack.c.b16 %v818, %v815
    %v927 = vpack.c.b16 %v822, %v819
    %v928 = vpack.c.b16 %v823, %v820
    %v929 = vpack.c.b16 %v824, %v821
    %v930 = vpack.c.b16 %v828, %v825
    %v931 = vpack.c.b16 %v829, %v826
    %v932 = vpack.c.b16 %v830, %v827
    %v933 = vpack.c.b16 %v834, %v831
    %v934 = vpack.c.b16 %v835, %v832
    %v935 = vpack.c.b16 %v836, %v833
    %v936 = vpack.c.b16 %v840, %v837
    %v937 = vpack.c.b16 %v841, %v838
    %v938 = vpack.c.b16 %v842, %v839
    %1035 = vmatprep.subr.bf16.mxu0 %v865
    %1036 = vmatpush1.bf16.msra.mxu0 %v864
    %1037 = vmatprep.subr.bf16.mxu0 %v862
    %1038 = vmatpush1.bf16.msra.mxu0 %v861
    %1039 = vmatprep.subr.bf16.mxu0 %v859
    %1040 = vmatpush1.bf16.msra.mxu0 %v858
    %1041 = vmatprep.subr.bf16.mxu0 %v856
    %1042 = vmatpush1.bf16.msra.mxu0 %v855
    %1043 = vmatprep.subr.bf16.mxu0 %v853
    %1044 = vmatpush1.bf16.msra.mxu0 %v852
    %1045 = vmatprep.subr.bf16.mxu0 %v850
    %1046 = vmatpush1.bf16.msra.mxu0 %v849
    %1047 = vmatprep.subr.bf16.mxu0 %v847
    %1048 = vmatpush1.bf16.msra.mxu0 %v846
    %1049 = vmatprep.subr.bf16.mxu0 %v844
    %1050 = vmatpush1.bf16.msra.mxu0 %v843
    %1051 = vmatprep.subr.bf16.mxu0 %v889
    %1052 = vmatpush2.bf16.msra.mxu0 %v888
    %1053 = vmatprep.subr.bf16.mxu0 %v886
    %1054 = vmatpush2.bf16.msra.mxu0 %v885
    %1055 = vmatprep.subr.bf16.mxu0 %v883
    %1056 = vmatpush2.bf16.msra.mxu0 %v882
    %1057 = vmatprep.subr.bf16.mxu0 %v880
    %1058 = vmatpush2.bf16.msra.mxu0 %v879
    %1059 = vmatprep.subr.bf16.mxu0 %v877
    %1060 = vmatpush2.bf16.msra.mxu0 %v876
    %1061 = vmatprep.subr.bf16.mxu0 %v874
    %1062 = vmatpush2.bf16.msra.mxu0 %v873
    %1063 = vmatprep.subr.bf16.mxu0 %v871
    %1064 = vmatpush2.bf16.msra.mxu0 %v870
    %1065 = vmatprep.subr.bf16.mxu0 %v868
    %1066 = vmatpush2.bf16.msra.mxu0 %v867
    %1067 = vmatprep.mubr.bf16.mxu0 %v392
    %1068 = vmatmul.mubr.bf16.gmra.mxu0 %v391
    %v1069 = vpop.f32.mrf.mxu0
    %v1070 = vadd.f32 %v287, %v1069
    %v1071 = vpop.f32.mrf.mxu0
    %v1072 = vadd.f32 %v289, %v1071
    %v1073 = vpop.f32.mrf.mxu0
    %v1074 = vpop.f32.mrf.mxu0
    %1075 = vdwg.mxu0
    %1076 = vmatprep.subr.bf16.mxu0 %v913
    %1077 = vmatpush1.bf16.msra.mxu0 %v912
    %1078 = vmatprep.subr.bf16.mxu0 %v910
    %1079 = vmatpush1.bf16.msra.mxu0 %v909
    %1080 = vmatprep.subr.bf16.mxu0 %v907
    %1081 = vmatpush1.bf16.msra.mxu0 %v906
    %1082 = vmatprep.subr.bf16.mxu0 %v904
    %1083 = vmatpush1.bf16.msra.mxu0 %v903
    %1084 = vmatprep.subr.bf16.mxu0 %v901
    %1085 = vmatpush1.bf16.msra.mxu0 %v900
    %1086 = vmatprep.subr.bf16.mxu0 %v898
    %1087 = vmatpush1.bf16.msra.mxu0 %v897
    %1088 = vmatprep.subr.bf16.mxu0 %v895
    %1089 = vmatpush1.bf16.msra.mxu0 %v894
    %1090 = vmatprep.subr.bf16.mxu0 %v892
    %1091 = vmatpush1.bf16.msra.mxu0 %v891
    %1092 = vmatprep.subr.bf16.mxu0 %v937
    %1093 = vmatpush2.bf16.msra.mxu0 %v936
    %1094 = vmatprep.subr.bf16.mxu0 %v934
    %1095 = vmatpush2.bf16.msra.mxu0 %v933
    %1096 = vmatprep.subr.bf16.mxu0 %v931
    %1097 = vmatpush2.bf16.msra.mxu0 %v930
    %1098 = vmatprep.subr.bf16.mxu0 %v928
    %1099 = vmatpush2.bf16.msra.mxu0 %v927
    %1100 = vmatprep.subr.bf16.mxu0 %v925
    %1101 = vmatpush2.bf16.msra.mxu0 %v924
    %1102 = vmatprep.subr.bf16.mxu0 %v922
    %1103 = vmatpush2.bf16.msra.mxu0 %v921
    %1104 = vmatprep.subr.bf16.mxu0 %v919
    %1105 = vmatpush2.bf16.msra.mxu0 %v918
    %1106 = vmatprep.subr.bf16.mxu0 %v916
    %1107 = vmatpush2.bf16.msra.mxu0 %v915
    %1108 = vmatprep.mubr.bf16.mxu0 %v394
    %1109 = vmatmul.mubr.bf16.gmra.mxu0 %v393
    %v1110 = vpop.f32.mrf.mxu0
    %v1111 = vadd.f32 %v1070, %v1110
    %v1112 = vpop.f32.mrf.mxu0
    %v1113 = vadd.f32 %v1072, %v1112
    %v1114 = vpop.f32.mrf.mxu0
    %v1115 = vpop.f32.mrf.mxu0
    %1116 = vdwg.mxu0
    %1117 = vmatprep.subr.bf16.mxu0 0
    %1118 = vmatpush1.bf16.msra.mxu0 %v866
    %1119 = vmatprep.subr.bf16.mxu0 0
    %1120 = vmatpush1.bf16.msra.mxu0 %v863
    %1121 = vmatprep.subr.bf16.mxu0 0
    %1122 = vmatpush1.bf16.msra.mxu0 %v860
    %1123 = vmatprep.subr.bf16.mxu0 0
    %1124 = vmatpush1.bf16.msra.mxu0 %v857
    %1125 = vmatprep.subr.bf16.mxu0 0
    %1126 = vmatpush1.bf16.msra.mxu0 %v854
    %1127 = vmatprep.subr.bf16.mxu0 0
    %1128 = vmatpush1.bf16.msra.mxu0 %v851
    %1129 = vmatprep.subr.bf16.mxu0 0
    %1130 = vmatpush1.bf16.msra.mxu0 %v848
    %1131 = vmatprep.subr.bf16.mxu0 0
    %1132 = vmatpush1.bf16.msra.mxu0 %v845
    %1133 = vmatprep.subr.bf16.mxu0 0
    %1134 = vmatpush2.bf16.msra.mxu0 %v890
    %1135 = vmatprep.subr.bf16.mxu0 0
    %1136 = vmatpush2.bf16.msra.mxu0 %v887
    %1137 = vmatprep.subr.bf16.mxu0 0
    %1138 = vmatpush2.bf16.msra.mxu0 %v884
    %1139 = vmatprep.subr.bf16.mxu0 0
    %1140 = vmatpush2.bf16.msra.mxu0 %v881
    %1141 = vmatprep.subr.bf16.mxu0 0
    %1142 = vmatpush2.bf16.msra.mxu0 %v878
    %1143 = vmatprep.subr.bf16.mxu0 0
    %1144 = vmatpush2.bf16.msra.mxu0 %v875
    %1145 = vmatprep.subr.bf16.mxu0 0
    %1146 = vmatpush2.bf16.msra.mxu0 %v872
    %1147 = vmatprep.subr.bf16.mxu0 0
    %1148 = vmatpush2.bf16.msra.mxu0 %v869
    %1149 = vmatprep.mubr.bf16.mxu0 %v392
    %1150 = vmatmul.mubr.bf16.gmra.mxu0 %v391
    %v1151 = vpop.f32.mrf.mxu0
    %v1152 = vadd.f32 %v358, %v1151
    %v1153 = vpop.f32.mrf.mxu0
    %v1154 = vpop.f32.mrf.mxu0
    %v1155 = vpop.f32.mrf.mxu0
    %1156 = vdwg.mxu0
    %1157 = vmatprep.subr.bf16.mxu0 0
    %1158 = vmatpush1.bf16.msra.mxu0 %v914
    %1159 = vmatprep.subr.bf16.mxu0 0
    %1160 = vmatpush1.bf16.msra.mxu0 %v911
    %1161 = vmatprep.subr.bf16.mxu0 0
    %1162 = vmatpush1.bf16.msra.mxu0 %v908
    %1163 = vmatprep.subr.bf16.mxu0 0
    %1164 = vmatpush1.bf16.msra.mxu0 %v905
    %1165 = vmatprep.subr.bf16.mxu0 0
    %1166 = vmatpush1.bf16.msra.mxu0 %v902
    %1167 = vmatprep.subr.bf16.mxu0 0
    %1168 = vmatpush1.bf16.msra.mxu0 %v899
    %1169 = vmatprep.subr.bf16.mxu0 0
    %1170 = vmatpush1.bf16.msra.mxu0 %v896
    %1171 = vmatprep.subr.bf16.mxu0 0
    %1172 = vmatpush1.bf16.msra.mxu0 %v893
    %1173 = vmatprep.subr.bf16.mxu0 0
    %1174 = vmatpush2.bf16.msra.mxu0 %v938
    %1175 = vmatprep.subr.bf16.mxu0 0
    %1176 = vmatpush2.bf16.msra.mxu0 %v935
    %1177 = vmatprep.subr.bf16.mxu0 0
    %1178 = vmatpush2.bf16.msra.mxu0 %v932
    %1179 = vmatprep.subr.bf16.mxu0 0
    %1180 = vmatpush2.bf16.msra.mxu0 %v929
    %1181 = vmatprep.subr.bf16.mxu0 0
    %1182 = vmatpush2.bf16.msra.mxu0 %v926
    %1183 = vmatprep.subr.bf16.mxu0 0
    %1184 = vmatpush2.bf16.msra.mxu0 %v923
    %1185 = vmatprep.subr.bf16.mxu0 0
    %1186 = vmatpush2.bf16.msra.mxu0 %v920
    %1187 = vmatprep.subr.bf16.mxu0 0
    %1188 = vmatpush2.bf16.msra.mxu0 %v917
    %1189 = vmatprep.mubr.bf16.mxu0 %v394
    %1190 = vmatmul.mubr.bf16.gmra.mxu0 %v393
    %v1191 = vpop.f32.mrf.mxu0
    %v1192 = vadd.f32 %v1152, %v1191
    %v1193 = vpop.f32.mrf.mxu0
    %v1194 = vpop.f32.mrf.mxu0
    %v1195 = vpop.f32.mrf.mxu0
    %1196 = vdwg.mxu0
    %v1197 = vld [vmem:[%s4] sm:$0x7]
    %v1199 = vlaneseq
    %v1200 = vshrl.u32 %v1199, 7
    %v1201 = vsub.s32 0, %v1200
    %v1202 = vrot.slane %v1197, %v1201
    %v1203 = vlaneseq
    %v1204 = vshrl.u32 %v1203, 7
    %v1205 = vsub.s32 1, %v1204
    %v1206 = vrot.slane %v1197, %v1205
    %v1207 = vlaneseq
    %v1208 = vshrl.u32 %v1207, 7
    %v1209 = vsub.s32 2, %v1208
    %v1210 = vrot.slane %v1197, %v1209
    %v1214 = vadd.f32 %v1111, %v1202
    %v1215 = vadd.f32 %v1113, %v1206
    %v1216 = vadd.f32 %v1192, %v1210
    %v1217 = vmax.f32 %v1214, 0.0
    %v1218 = vmax.f32 %v1215, 0.0
    %v1219 = vmax.f32 %v1216, 0.0
    %v1220 = vld [vmem:[%s5] sm:$0x7]
    %v1221 = vld [vmem:[#allocation2] sm:$0x1]
    %v1223 = vlaneseq
    %v1224 = vshrl.u32 %v1223, 7
    %v1225 = vsub.s32 0, %v1224
    %v1226 = vrot.slane %v1220, %v1225
    %v1227 = vlaneseq
    %v1228 = vshrl.u32 %v1227, 7
    %v1229 = vsub.s32 1, %v1228
    %v1230 = vrot.slane %v1220, %v1229
    %v1231 = vlaneseq
    %v1232 = vshrl.u32 %v1231, 7
    %v1233 = vsub.s32 2, %v1232
    %v1234 = vrot.slane %v1220, %v1233
    %v1238 = vmul.f32 %v1217, %v1226
    %v1239 = vmul.f32 %v1218, %v1230
    %v1240 = vmul.f32 %v1219, %v1234
    %v1241 = vadd.f32 %v1238, %v1239
    %v1242 = vadd.f32 %v1241, %v1240
    %1243 = vadd.xlane.f32.xlu0 %v1242
    %v1244 = vpop.xlane.xlu0 %1243
    %v1246 = vlaneseq
    %v1247 = vshrl.u32 %v1246, 7
    %v1248 = vsub.s32 0, %v1247
    %v1249 = vrot.slane %v1221, %v1248
    %v1251 = vadd.f32 %v1244, %v1249
    %vm1252 = vcmask 7168
    %1253 = vst.msk [vmem:[%s7] sm:$0xff] %vm1252, %v1251
    // Predicated region
    $region42: #{tpu_custom_call.1} parent=1 // pred_check
      _
    $region43: #{tpu_custom_call.1} parent=1 // pred_check_branch
      %1255 = sbr.rel (0) target = $region45
    $region44: #{tpu_custom_call.1} parent=1 // pred_region
      _
    $region45: #{tpu_custom_call.1} parent=1 // pred_fallthru
      _
    // Predicated region
    $region46: #{tpu_custom_call.1} parent=1 // pred_check
      _
    $region47: #{tpu_custom_call.1} parent=1 // pred_check_branch
      %1257 = sbr.rel (0) target = $region49
    $region48: #{tpu_custom_call.1} parent=1 // pred_region
      _
    $region49: #{tpu_custom_call.1} parent=1 // pred_fallthru
      _
    %1258 = vsyncpa [#allocation4], 1
    %1259 = vsyncpa [#allocation6], 1

</llo_original>
